<compile_context>
chip_gen: v7x
topology: tpu7x:2x2x1
jax: 0.10.0
libtpu: 0.0.40
codegen_flags: <defaults>
</compile_context>

<pallas_src>
import numpy as np
import jax
import jax.numpy as jnp
from jax import lax
from jax.experimental import pallas as pl
from jax.experimental.pallas import tpu as pltpu

LANES = 128
SUBLANES = 8
TILE_ROWS_MAX = 1024   # 512 KiB per f32 input stream per grid step
PAD_LOGIT = -1e30      # padded/masked logits contribute exactly 0 to every stat


def _make_kernel(P, tile_rows, pstats, ntot, focal_mode, valid_rows, ragged):
    """Streaming-reduction kernel for a fixed P / tile / loss mode."""
    n_chunks = tile_rows // SUBLANES
    # Largest divisor of n_chunks that is <= 8: inner static unroll factor.
    unroll = max(u for u in range(1, 9) if n_chunks % u == 0)
    n_groups = n_chunks // unroll

    def kernel(*refs):
        x_refs = refs[:P]          # P prediction tiles, (tile_rows, 128)
        t_ref = refs[P]            # target tile,        (tile_rows, 128)
        o_ref = refs[P + 1]        # resident accumulator, (ntot, 8, 128)

        @pl.when(pl.program_id(0) == 0)
        def _():
            o_ref[...] = jnp.zeros_like(o_ref)

        if ragged:
            row0 = pl.program_id(0) * tile_rows
            sub_iota = lax.broadcasted_iota(jnp.int32, (SUBLANES, LANES), 0)

        def process_chunk(start, accs):
            accs = list(accs)
            t = t_ref[pl.ds(start, SUBLANES), :].astype(jnp.float32)
            xs = [x_refs[p][pl.ds(start, SUBLANES), :].astype(jnp.float32)
                  for p in range(P)]
            if ragged:
                # Rows past the logical end of the input (OOB part of the last
                # tile) are replaced by values whose statistics are exactly 0.
                mask = (row0 + start + sub_iota) < valid_rows
                t = jnp.where(mask, t, 0.0)
                xs = [jnp.where(mask, x, PAD_LOGIT) for x in xs]

            accs[ntot - 1] = accs[ntot - 1] + t           # shared sum(target)

            for p in range(P):
                x = xs[p]
                e = jnp.exp(-jnp.abs(x))                            # EUP
                one_plus_e = 1.0 + e
                # stable binary_cross_entropy_with_logits
                bce = jnp.maximum(x, 0.0) - x * t + jnp.log(one_plus_e)   # EUP
                inv = pl.reciprocal(one_plus_e, approx=True)        # EUP
                ge = x >= 0.0
                sig = jnp.where(ge, inv, e * inv)                   # sigmoid(x)
                tp = jnp.where(ge, t, 0.0)                          # hard * t
                hard = jnp.where(ge, 1.0, 0.0)                      # sig>=.5 <=> x>=0
                base = p * pstats
                if focal_mode:
                    # exact for binary targets: exp(-bce) == sig^t (1-sig)^(1-t)
                    one_minus_pt = jnp.where(t >= 0.5, 1.0 - sig, sig)
                    focal_w = jnp.exp(
                        1.333 * jnp.log(jnp.maximum(one_minus_pt, 1e-20)))
                    accs[base + 0] = accs[base + 0] + focal_w * bce
                    accs[base + 1] = accs[base + 1] + tp
                    accs[base + 2] = accs[base + 2] + hard
                else:
                    accs[base + 0] = accs[base + 0] + bce
                    accs[base + 1] = accs[base + 1] + sig
                    accs[base + 2] = accs[base + 2] + sig * t
                    accs[base + 3] = accs[base + 3] + tp
                    accs[base + 4] = accs[base + 4] + hard
            return tuple(accs)

        def group_body(g, accs):
            for j in range(unroll):
                idx = (g * unroll + j) * SUBLANES
                if n_groups > 1:
                    idx = pl.multiple_of(idx, SUBLANES)
                accs = process_chunk(idx, accs)
            return accs

        init = tuple(jnp.zeros((SUBLANES, LANES), jnp.float32)
                     for _ in range(ntot))
        if n_groups > 1:
            accs = lax.fori_loop(0, n_groups, group_body, init)
        else:
            accs = group_body(0, init)

        # One read-modify-write of the resident output block per statistic.
        for s in range(ntot):
            o_ref[s] += accs[s]

    return kernel


def binary_metrics_for_list(predicts, target, weights, *, loss_mode="dice+bce",
                            smooth=1024.0, sparse_label=False):
    if sparse_label:
        # TODO(synk): sparse-label gather (boolean masking to a dynamic size) not supported.
        raise NotImplementedError("sparse_label=True path not implemented")
    if loss_mode not in ("focal", "dice+bce"):
        raise ValueError("Invalid loss. Use 'focal' or 'dice+bce'.")

    P = len(predicts)
    n = int(np.prod(target.shape))
    focal_mode = loss_mode == "focal"
    pstats = 3 if focal_mode else 5
    ntot = P * pstats + 1                      # + shared sum(target)

    # ---- lane-dense 2D views; zero-copy reshape on the common aligned path ----
    if n % LANES == 0 and n // LANES >= SUBLANES:
        rows = n // LANES
        xs2d = [jnp.reshape(p, (rows, LANES)) for p in predicts]
        t2d = jnp.reshape(target, (rows, LANES))
    else:
        # Rare fallback (unaligned or tiny inputs): minimal pad so a 2D view
        # exists.  Padded logits -> PAD_LOGIT, padded target -> 0: both make
        # every per-element statistic exactly 0, so no extra masking needed.
        total = -(-n // (SUBLANES * LANES)) * (SUBLANES * LANES)
        pad = total - n
        rows = total // LANES
        xs2d = [jnp.reshape(jnp.pad(jnp.reshape(p, (-1,)), (0, pad),
                                    constant_values=PAD_LOGIT), (rows, LANES))
                for p in predicts]
        t2d = jnp.reshape(jnp.pad(jnp.reshape(target, (-1,)), (0, pad)),
                          (rows, LANES))

    tile_rows = min(TILE_ROWS_MAX, -(-rows // SUBLANES) * SUBLANES)
    blocks = -(-rows // tile_rows)             # only the last block can be ragged
    ragged = (rows % tile_rows) != 0

    kernel = _make_kernel(P, tile_rows, pstats, ntot, focal_mode, rows, ragged)

    partials = pl.pallas_call(
        kernel,
        out_shape=jax.ShapeDtypeStruct((ntot, SUBLANES, LANES), jnp.float32),
        grid_spec=pltpu.PrefetchScalarGridSpec(
            num_scalar_prefetch=0,
            grid=(blocks,),
            in_specs=[pl.BlockSpec((tile_rows, LANES), lambda i: (i, 0))
                      for _ in range(P + 1)],
            out_specs=pl.BlockSpec((ntot, SUBLANES, LANES), lambda i: (0, 0, 0)),
        ),
        compiler_params=pltpu.CompilerParams(
            dimension_semantics=("arbitrary",)),
    )(*xs2d, t2d)

    # tiny final reduction outside the kernel
    s = jnp.sum(partials, axis=(1, 2))         # (ntot,)
    per_p = s[: P * pstats].reshape(P, pstats)
    sum_t = s[ntot - 1]

    w = jnp.asarray(weights, dtype=jnp.float32)
    Nf = jnp.float32(n)

    if focal_mode:
        sum_focal = per_p[:, 0]
        tp = per_p[:, 1]
        sum_hard = per_p[:, 2]
        loss = jnp.sum(w * sum_focal) / Nf
        intersection = jnp.sum(2.0 * tp)
        union = jnp.sum(sum_hard + sum_t)
    else:
        sum_bce = per_p[:, 0]
        sum_sig = per_p[:, 1]
        sum_sig_t = per_p[:, 2]
        tp = per_p[:, 3]
        sum_hard = per_p[:, 4]
        bce_loss = jnp.sum(w * sum_bce) / Nf
        dice_loss = jnp.sum(
            w * (1.0 - (2.0 * sum_sig_t + smooth) / (sum_sig + sum_t + smooth)))
        loss = 0.1 * dice_loss + 1.9 * bce_loss
        intersection = jnp.sum(w * 2.0 * tp)
        union = jnp.sum(w * (sum_hard + sum_t))

    TP = jnp.sum(tp)
    FN = jnp.sum(sum_t - tp)
    TN = jnp.sum(Nf - sum_hard - sum_t + tp)
    FP = jnp.sum(sum_hard - tp)
    return loss, intersection, union, TP, FN, TN, FP


# ----------------------------- pure-JAX reference -----------------------------
def _reference(predicts, target, weights, loss_mode, smooth):
    t = target.reshape(-1).astype(jnp.float32)

    def stats(p):
        x = p.reshape(-1).astype(jnp.float32)
        bce = jnp.maximum(x, 0.0) - x * t + jnp.log1p(jnp.exp(-jnp.abs(x)))
        pt = jnp.exp(-bce)
        focal = jnp.mean(jnp.power(1.0 - pt, 1.333) * bce)
        sig = jax.nn.sigmoid(x)
        hard = jnp.where(sig >= 0.5, 1.0, 0.0)
        return (jnp.mean(bce), focal, jnp.sum(sig), jnp.sum(sig * t), jnp.sum(t),
                jnp.sum(hard * t), jnp.sum(hard * (1 - t)),
                jnp.sum((1 - hard) * t), jnp.sum((1 - hard) * (1 - t)))

    S = [stats(p) for p in predicts]
    w = weights
    inter_h = [2.0 * s[5] for s in S]
    union_h = [(s[5] + s[6]) + s[4] for s in S]
    if loss_mode == "focal":
        loss = sum(w[i] * S[i][1] for i in range(len(S)))
        intersection = sum(inter_h)
        union = sum(union_h)
    else:
        bce_loss = sum(w[i] * S[i][0] for i in range(len(S)))
        dice = sum(w[i] * (1.0 - (2.0 * S[i][3] + smooth) / (S[i][2] + S[i][4] + smooth))
                   for i in range(len(S)))
        loss = 0.1 * dice + 1.9 * bce_loss
        intersection = sum(w[i] * inter_h[i] for i in range(len(S)))
        union = sum(w[i] * union_h[i] for i in range(len(S)))
    tp = sum(s[5] for s in S)
    fp = sum(s[6] for s in S)
    fn = sum(s[7] for s in S)
    tn = sum(s[8] for s in S)
    return loss, intersection, union, tp, fn, tn, fp


if __name__ == "__main__":
    key = jax.random.PRNGKey(0)

    # (shape, n_predicts, weights)
    #   cfg1: lane-aligned, single block (zero-copy, unmasked path)
    #   cfg2: n % 128 != 0            (padded fallback path)
    #   cfg3: multi-block + ragged tail (fori_loop + in-kernel row masking)
    configs = [
        ((2, 1, 4, 16, 16), 3, [0.5, 0.3, 0.2]),
        ((1, 1, 3, 10, 10), 2, [0.6, 0.4]),
        ((2, 1, 16, 72, 64), 3, [0.5, 0.3, 0.2]),
    ]

    for shape, n_pred, weights in configs:
        keys = jax.random.split(key, n_pred + 2)
        key = keys[0]
        predicts = [jax.random.normal(keys[i + 1], shape, jnp.float32) * 2.0
                    for i in range(n_pred)]
        target = (jax.random.uniform(keys[-1], shape) > 0.5).astype(jnp.float32)

        for mode in ("dice+bce", "focal"):
            out = binary_metrics_for_list(predicts, target, weights,
                                          loss_mode=mode, smooth=1024.0)
            out = jax.block_until_ready(out)
            ref = _reference(predicts, target, weights, mode, 1024.0)
            for o, r in zip(out, ref):
                np.testing.assert_allclose(np.asarray(o), np.asarray(r),
                                           rtol=2e-3, atol=2e-3)

    print("KERNEL_OK")
</pallas_src>

<mosaic_0001>
module attributes {stable_mosaic.version = 11 : i64} {
  func.func @kernel(%arg0: i32, %arg1: memref<16x128xf32, #tpu.memory_space<vmem>>, %arg2: memref<16x128xf32, #tpu.memory_space<vmem>>, %arg3: memref<16x128xf32, #tpu.memory_space<vmem>>, %arg4: memref<16x128xf32, #tpu.memory_space<vmem>>, %arg5: memref<16x8x128xf32, #tpu.memory_space<vmem>>) attributes {dimension_semantics = [#tpu.dimension_semantics<arbitrary>], iteration_bounds = array<i64: 1>, scalar_prefetch = 0 : i64, scratch_operands = 0 : i64, tpu.core_type = #tpu.core_type<tc>, window_params = [{transform_indices = @transform_0, window_bounds = array<i64: 16, 128>}, {transform_indices = @transform_1, window_bounds = array<i64: 16, 128>}, {transform_indices = @transform_2, window_bounds = array<i64: 16, 128>}, {transform_indices = @transform_3, window_bounds = array<i64: 16, 128>}, {pipeline_mode = #tpu.pipeline_mode<synchronous>, transform_indices = @transform_4, window_bounds = array<i64: 16, 8, 128>}]} {
    %c0_i32 = arith.constant 0 : i32
    %0 = arith.cmpi eq, %arg0, %c0_i32 : i32
    %1 = arith.extui %0 : i1 to i32
    %c0_i32_0 = arith.constant 0 : i32
    %2 = arith.cmpi ne, %1, %c0_i32_0 : i32
    scf.if %2 {
      %cst_154 = arith.constant 0.000000e+00 : f32
      %293 = vector.broadcast %cst_154 : f32 to vector<16x8x128xf32>
      %c0_155 = arith.constant 0 : index
      %c0_156 = arith.constant 0 : index
      %c0_157 = arith.constant 0 : index
      %294 = vector.load %arg5[%c0_155, %c0_156, %c0_157] : memref<16x8x128xf32, #tpu.memory_space<vmem>>, vector<16x8x128xf32>
      tpu.vector_store %arg5[%c0_155, %c0_156, %c0_157], %293 {strides = array<i32>} : memref<16x8x128xf32, #tpu.memory_space<vmem>>, vector<16x8x128xf32>,
    } else {
    }
    %cst = arith.constant 0.000000e+00 : f32
    %3 = vector.broadcast %cst : f32 to vector<8x128xf32>
    %cst_1 = arith.constant 0.000000e+00 : f32
    %4 = vector.broadcast %cst_1 : f32 to vector<8x128xf32>
    %cst_2 = arith.constant 0.000000e+00 : f32
    %5 = vector.broadcast %cst_2 : f32 to vector<8x128xf32>
    %cst_3 = arith.constant 0.000000e+00 : f32
    %6 = vector.broadcast %cst_3 : f32 to vector<8x128xf32>
    %cst_4 = arith.constant 0.000000e+00 : f32
    %7 = vector.broadcast %cst_4 : f32 to vector<8x128xf32>
    %cst_5 = arith.constant 0.000000e+00 : f32
    %8 = vector.broadcast %cst_5 : f32 to vector<8x128xf32>
    %cst_6 = arith.constant 0.000000e+00 : f32
    %9 = vector.broadcast %cst_6 : f32 to vector<8x128xf32>
    %cst_7 = arith.constant 0.000000e+00 : f32
    %10 = vector.broadcast %cst_7 : f32 to vector<8x128xf32>
    %cst_8 = arith.constant 0.000000e+00 : f32
    %11 = vector.broadcast %cst_8 : f32 to vector<8x128xf32>
    %cst_9 = arith.constant 0.000000e+00 : f32
    %12 = vector.broadcast %cst_9 : f32 to vector<8x128xf32>
    %cst_10 = arith.constant 0.000000e+00 : f32
    %13 = vector.broadcast %cst_10 : f32 to vector<8x128xf32>
    %cst_11 = arith.constant 0.000000e+00 : f32
    %14 = vector.broadcast %cst_11 : f32 to vector<8x128xf32>
    %cst_12 = arith.constant 0.000000e+00 : f32
    %15 = vector.broadcast %cst_12 : f32 to vector<8x128xf32>
    %cst_13 = arith.constant 0.000000e+00 : f32
    %16 = vector.broadcast %cst_13 : f32 to vector<8x128xf32>
    %cst_14 = arith.constant 0.000000e+00 : f32
    %17 = vector.broadcast %cst_14 : f32 to vector<8x128xf32>
    %cst_15 = arith.constant 0.000000e+00 : f32
    %18 = vector.broadcast %cst_15 : f32 to vector<8x128xf32>
    %c0 = arith.constant 0 : index
    %c0_16 = arith.constant 0 : index
    %19 = vector.load %arg4[%c0, %c0_16] : memref<16x128xf32, #tpu.memory_space<vmem>>, vector<8x128xf32>
    %c0_17 = arith.constant 0 : index
    %c0_18 = arith.constant 0 : index
    %20 = vector.load %arg1[%c0_17, %c0_18] : memref<16x128xf32, #tpu.memory_space<vmem>>, vector<8x128xf32>
    %c0_19 = arith.constant 0 : index
    %c0_20 = arith.constant 0 : index
    %21 = vector.load %arg2[%c0_19, %c0_20] : memref<16x128xf32, #tpu.memory_space<vmem>>, vector<8x128xf32>
    %c0_21 = arith.constant 0 : index
    %c0_22 = arith.constant 0 : index
    %22 = vector.load %arg3[%c0_21, %c0_22] : memref<16x128xf32, #tpu.memory_space<vmem>>, vector<8x128xf32>
    %23 = arith.addf %18, %19 : vector<8x128xf32>
    %24 = math.absf %20 : vector<8x128xf32>
    %cst_23 = arith.constant 0.000000e+00 : f32
    %25 = vector.broadcast %cst_23 : f32 to vector<8x128xf32>
    %26 = arith.subf %25, %24 : vector<8x128xf32>
    %27 = math.exp %26 : vector<8x128xf32>
    %cst_24 = arith.constant 1.000000e+00 : f32
    %28 = vector.broadcast %cst_24 : f32 to vector<8x128xf32>
    %29 = arith.addf %28, %27 : vector<8x128xf32>
    %cst_25 = arith.constant 0.000000e+00 : f32
    %30 = vector.broadcast %cst_25 : f32 to vector<8x128xf32>
    %31 = arith.maximumf %20, %30 : vector<8x128xf32>
    %32 = arith.mulf %20, %19 : vector<8x128xf32>
    %33 = arith.subf %31, %32 : vector<8x128xf32>
    %34 = math.log %29 : vector<8x128xf32>
    %35 = arith.addf %33, %34 : vector<8x128xf32>
    %36 = tpu.reciprocal %29 {approx = true} : vector<8x128xf32> -> vector<8x128xf32>
    %cst_26 = arith.constant 0.000000e+00 : f32
    %37 = vector.broadcast %cst_26 : f32 to vector<8x128xf32>
    %38 = arith.cmpf oge, %20, %37 : vector<8x128xf32>
    %39 = arith.mulf %27, %36 : vector<8x128xf32>
    %40 = arith.select %38, %36, %39 : vector<8x128xi1>, vector<8x128xf32>
    %cst_27 = arith.constant 0.000000e+00 : f32
    %41 = vector.broadcast %cst_27 : f32 to vector<8x128xf32>
    %42 = arith.select %38, %19, %41 : vector<8x128xi1>, vector<8x128xf32>
    %cst_28 = arith.constant 1.000000e+00 : f32
    %cst_29 = arith.constant 0.000000e+00 : f32
    %43 = vector.broadcast %cst_28 : f32 to vector<8x128xf32>
    %44 = vector.broadcast %cst_29 : f32 to vector<8x128xf32>
    %45 = arith.select %38, %43, %44 : vector<8x128xi1>, vector<8x128xf32>
    %46 = arith.addf %3, %35 : vector<8x128xf32>
    %47 = arith.addf %4, %40 : vector<8x128xf32>
    %48 = arith.mulf %40, %19 : vector<8x128xf32>
    %49 = arith.addf %5, %48 : vector<8x128xf32>
    %50 = arith.addf %6, %42 : vector<8x128xf32>
    %51 = arith.addf %7, %45 : vector<8x128xf32>
    %52 = math.absf %21 : vector<8x128xf32>
    %cst_30 = arith.constant 0.000000e+00 : f32
    %53 = vector.broadcast %cst_30 : f32 to vector<8x128xf32>
    %54 = arith.subf %53, %52 : vector<8x128xf32>
    %55 = math.exp %54 : vector<8x128xf32>
    %cst_31 = arith.constant 1.000000e+00 : f32
    %56 = vector.broadcast %cst_31 : f32 to vector<8x128xf32>
    %57 = arith.addf %56, %55 : vector<8x128xf32>
    %cst_32 = arith.constant 0.000000e+00 : f32
    %58 = vector.broadcast %cst_32 : f32 to vector<8x128xf32>
    %59 = arith.maximumf %21, %58 : vector<8x128xf32>
    %60 = arith.mulf %21, %19 : vector<8x128xf32>
    %61 = arith.subf %59, %60 : vector<8x128xf32>
    %62 = math.log %57 : vector<8x128xf32>
    %63 = arith.addf %61, %62 : vector<8x128xf32>
    %64 = tpu.reciprocal %57 {approx = true} : vector<8x128xf32> -> vector<8x128xf32>
    %cst_33 = arith.constant 0.000000e+00 : f32
    %65 = vector.broadcast %cst_33 : f32 to vector<8x128xf32>
    %66 = arith.cmpf oge, %21, %65 : vector<8x128xf32>
    %67 = arith.mulf %55, %64 : vector<8x128xf32>
    %68 = arith.select %66, %64, %67 : vector<8x128xi1>, vector<8x128xf32>
    %cst_34 = arith.constant 0.000000e+00 : f32
    %69 = vector.broadcast %cst_34 : f32 to vector<8x128xf32>
    %70 = arith.select %66, %19, %69 : vector<8x128xi1>, vector<8x128xf32>
    %cst_35 = arith.constant 1.000000e+00 : f32
    %cst_36 = arith.constant 0.000000e+00 : f32
    %71 = vector.broadcast %cst_35 : f32 to vector<8x128xf32>
    %72 = vector.broadcast %cst_36 : f32 to vector<8x128xf32>
    %73 = arith.select %66, %71, %72 : vector<8x128xi1>, vector<8x128xf32>
    %74 = arith.addf %8, %63 : vector<8x128xf32>
    %75 = arith.addf %9, %68 : vector<8x128xf32>
    %76 = arith.mulf %68, %19 : vector<8x128xf32>
    %77 = arith.addf %10, %76 : vector<8x128xf32>
    %78 = arith.addf %11, %70 : vector<8x128xf32>
    %79 = arith.addf %12, %73 : vector<8x128xf32>
    %80 = math.absf %22 : vector<8x128xf32>
    %cst_37 = arith.constant 0.000000e+00 : f32
    %81 = vector.broadcast %cst_37 : f32 to vector<8x128xf32>
    %82 = arith.subf %81, %80 : vector<8x128xf32>
    %83 = math.exp %82 : vector<8x128xf32>
    %cst_38 = arith.constant 1.000000e+00 : f32
    %84 = vector.broadcast %cst_38 : f32 to vector<8x128xf32>
    %85 = arith.addf %84, %83 : vector<8x128xf32>
    %cst_39 = arith.constant 0.000000e+00 : f32
    %86 = vector.broadcast %cst_39 : f32 to vector<8x128xf32>
    %87 = arith.maximumf %22, %86 : vector<8x128xf32>
    %88 = arith.mulf %22, %19 : vector<8x128xf32>
    %89 = arith.subf %87, %88 : vector<8x128xf32>
    %90 = math.log %85 : vector<8x128xf32>
    %91 = arith.addf %89, %90 : vector<8x128xf32>
    %92 = tpu.reciprocal %85 {approx = true} : vector<8x128xf32> -> vector<8x128xf32>
    %cst_40 = arith.constant 0.000000e+00 : f32
    %93 = vector.broadcast %cst_40 : f32 to vector<8x128xf32>
    %94 = arith.cmpf oge, %22, %93 : vector<8x128xf32>
    %95 = arith.mulf %83, %92 : vector<8x128xf32>
    %96 = arith.select %94, %92, %95 : vector<8x128xi1>, vector<8x128xf32>
    %cst_41 = arith.constant 0.000000e+00 : f32
    %97 = vector.broadcast %cst_41 : f32 to vector<8x128xf32>
    %98 = arith.select %94, %19, %97 : vector<8x128xi1>, vector<8x128xf32>
    %cst_42 = arith.constant 1.000000e+00 : f32
    %cst_43 = arith.constant 0.000000e+00 : f32
    %99 = vector.broadcast %cst_42 : f32 to vector<8x128xf32>
    %100 = vector.broadcast %cst_43 : f32 to vector<8x128xf32>
    %101 = arith.select %94, %99, %100 : vector<8x128xi1>, vector<8x128xf32>
    %102 = arith.addf %13, %91 : vector<8x128xf32>
    %103 = arith.addf %14, %96 : vector<8x128xf32>
    %104 = arith.mulf %96, %19 : vector<8x128xf32>
    %105 = arith.addf %15, %104 : vector<8x128xf32>
    %106 = arith.addf %16, %98 : vector<8x128xf32>
    %107 = arith.addf %17, %101 : vector<8x128xf32>
    %c8 = arith.constant 8 : index
    %c0_44 = arith.constant 0 : index
    %108 = vector.load %arg4[%c8, %c0_44] : memref<16x128xf32, #tpu.memory_space<vmem>>, vector<8x128xf32>
    %c8_45 = arith.constant 8 : index
    %c0_46 = arith.constant 0 : index
    %109 = vector.load %arg1[%c8_45, %c0_46] : memref<16x128xf32, #tpu.memory_space<vmem>>, vector<8x128xf32>
    %c8_47 = arith.constant 8 : index
    %c0_48 = arith.constant 0 : index
    %110 = vector.load %arg2[%c8_47, %c0_48] : memref<16x128xf32, #tpu.memory_space<vmem>>, vector<8x128xf32>
    %c8_49 = arith.constant 8 : index
    %c0_50 = arith.constant 0 : index
    %111 = vector.load %arg3[%c8_49, %c0_50] : memref<16x128xf32, #tpu.memory_space<vmem>>, vector<8x128xf32>
    %112 = arith.addf %23, %108 : vector<8x128xf32>
    %113 = math.absf %109 : vector<8x128xf32>
    %cst_51 = arith.constant 0.000000e+00 : f32
    %114 = vector.broadcast %cst_51 : f32 to vector<8x128xf32>
    %115 = arith.subf %114, %113 : vector<8x128xf32>
    %116 = math.exp %115 : vector<8x128xf32>
    %cst_52 = arith.constant 1.000000e+00 : f32
    %117 = vector.broadcast %cst_52 : f32 to vector<8x128xf32>
    %118 = arith.addf %117, %116 : vector<8x128xf32>
    %cst_53 = arith.constant 0.000000e+00 : f32
    %119 = vector.broadcast %cst_53 : f32 to vector<8x128xf32>
    %120 = arith.maximumf %109, %119 : vector<8x128xf32>
    %121 = arith.mulf %109, %108 : vector<8x128xf32>
    %122 = arith.subf %120, %121 : vector<8x128xf32>
    %123 = math.log %118 : vector<8x128xf32>
    %124 = arith.addf %122, %123 : vector<8x128xf32>
    %125 = tpu.reciprocal %118 {approx = true} : vector<8x128xf32> -> vector<8x128xf32>
    %cst_54 = arith.constant 0.000000e+00 : f32
    %126 = vector.broadcast %cst_54 : f32 to vector<8x128xf32>
    %127 = arith.cmpf oge, %109, %126 : vector<8x128xf32>
    %128 = arith.mulf %116, %125 : vector<8x128xf32>
    %129 = arith.select %127, %125, %128 : vector<8x128xi1>, vector<8x128xf32>
    %cst_55 = arith.constant 0.000000e+00 : f32
    %130 = vector.broadcast %cst_55 : f32 to vector<8x128xf32>
    %131 = arith.select %127, %108, %130 : vector<8x128xi1>, vector<8x128xf32>
    %cst_56 = arith.constant 1.000000e+00 : f32
    %cst_57 = arith.constant 0.000000e+00 : f32
    %132 = vector.broadcast %cst_56 : f32 to vector<8x128xf32>
    %133 = vector.broadcast %cst_57 : f32 to vector<8x128xf32>
    %134 = arith.select %127, %132, %133 : vector<8x128xi1>, vector<8x128xf32>
    %135 = arith.addf %46, %124 : vector<8x128xf32>
    %136 = arith.addf %47, %129 : vector<8x128xf32>
    %137 = arith.mulf %129, %108 : vector<8x128xf32>
    %138 = arith.addf %49, %137 : vector<8x128xf32>
    %139 = arith.addf %50, %131 : vector<8x128xf32>
    %140 = arith.addf %51, %134 : vector<8x128xf32>
    %141 = math.absf %110 : vector<8x128xf32>
    %cst_58 = arith.constant 0.000000e+00 : f32
    %142 = vector.broadcast %cst_58 : f32 to vector<8x128xf32>
    %143 = arith.subf %142, %141 : vector<8x128xf32>
    %144 = math.exp %143 : vector<8x128xf32>
    %cst_59 = arith.constant 1.000000e+00 : f32
    %145 = vector.broadcast %cst_59 : f32 to vector<8x128xf32>
    %146 = arith.addf %145, %144 : vector<8x128xf32>
    %cst_60 = arith.constant 0.000000e+00 : f32
    %147 = vector.broadcast %cst_60 : f32 to vector<8x128xf32>
    %148 = arith.maximumf %110, %147 : vector<8x128xf32>
    %149 = arith.mulf %110, %108 : vector<8x128xf32>
    %150 = arith.subf %148, %149 : vector<8x128xf32>
    %151 = math.log %146 : vector<8x128xf32>
    %152 = arith.addf %150, %151 : vector<8x128xf32>
    %153 = tpu.reciprocal %146 {approx = true} : vector<8x128xf32> -> vector<8x128xf32>
    %cst_61 = arith.constant 0.000000e+00 : f32
    %154 = vector.broadcast %cst_61 : f32 to vector<8x128xf32>
    %155 = arith.cmpf oge, %110, %154 : vector<8x128xf32>
    %156 = arith.mulf %144, %153 : vector<8x128xf32>
    %157 = arith.select %155, %153, %156 : vector<8x128xi1>, vector<8x128xf32>
    %cst_62 = arith.constant 0.000000e+00 : f32
    %158 = vector.broadcast %cst_62 : f32 to vector<8x128xf32>
    %159 = arith.select %155, %108, %158 : vector<8x128xi1>, vector<8x128xf32>
    %cst_63 = arith.constant 1.000000e+00 : f32
    %cst_64 = arith.constant 0.000000e+00 : f32
    %160 = vector.broadcast %cst_63 : f32 to vector<8x128xf32>
    %161 = vector.broadcast %cst_64 : f32 to vector<8x128xf32>
    %162 = arith.select %155, %160, %161 : vector<8x128xi1>, vector<8x128xf32>
    %163 = arith.addf %74, %152 : vector<8x128xf32>
    %164 = arith.addf %75, %157 : vector<8x128xf32>
    %165 = arith.mulf %157, %108 : vector<8x128xf32>
    %166 = arith.addf %77, %165 : vector<8x128xf32>
    %167 = arith.addf %78, %159 : vector<8x128xf32>
    %168 = arith.addf %79, %162 : vector<8x128xf32>
    %169 = math.absf %111 : vector<8x128xf32>
    %cst_65 = arith.constant 0.000000e+00 : f32
    %170 = vector.broadcast %cst_65 : f32 to vector<8x128xf32>
    %171 = arith.subf %170, %169 : vector<8x128xf32>
    %172 = math.exp %171 : vector<8x128xf32>
    %cst_66 = arith.constant 1.000000e+00 : f32
    %173 = vector.broadcast %cst_66 : f32 to vector<8x128xf32>
    %174 = arith.addf %173, %172 : vector<8x128xf32>
    %cst_67 = arith.constant 0.000000e+00 : f32
    %175 = vector.broadcast %cst_67 : f32 to vector<8x128xf32>
    %176 = arith.maximumf %111, %175 : vector<8x128xf32>
    %177 = arith.mulf %111, %108 : vector<8x128xf32>
    %178 = arith.subf %176, %177 : vector<8x128xf32>
    %179 = math.log %174 : vector<8x128xf32>
    %180 = arith.addf %178, %179 : vector<8x128xf32>
    %181 = tpu.reciprocal %174 {approx = true} : vector<8x128xf32> -> vector<8x128xf32>
    %cst_68 = arith.constant 0.000000e+00 : f32
    %182 = vector.broadcast %cst_68 : f32 to vector<8x128xf32>
    %183 = arith.cmpf oge, %111, %182 : vector<8x128xf32>
    %184 = arith.mulf %172, %181 : vector<8x128xf32>
    %185 = arith.select %183, %181, %184 : vector<8x128xi1>, vector<8x128xf32>
    %cst_69 = arith.constant 0.000000e+00 : f32
    %186 = vector.broadcast %cst_69 : f32 to vector<8x128xf32>
    %187 = arith.select %183, %108, %186 : vector<8x128xi1>, vector<8x128xf32>
    %cst_70 = arith.constant 1.000000e+00 : f32
    %cst_71 = arith.constant 0.000000e+00 : f32
    %188 = vector.broadcast %cst_70 : f32 to vector<8x128xf32>
    %189 = vector.broadcast %cst_71 : f32 to vector<8x128xf32>
    %190 = arith.select %183, %188, %189 : vector<8x128xi1>, vector<8x128xf32>
    %191 = arith.addf %102, %180 : vector<8x128xf32>
    %192 = arith.addf %103, %185 : vector<8x128xf32>
    %193 = arith.mulf %185, %108 : vector<8x128xf32>
    %194 = arith.addf %105, %193 : vector<8x128xf32>
    %195 = arith.addf %106, %187 : vector<8x128xf32>
    %196 = arith.addf %107, %190 : vector<8x128xf32>
    %c0_72 = arith.constant 0 : index
    %c0_73 = arith.constant 0 : index
    %c0_74 = arith.constant 0 : index
    %197 = vector.load %arg5[%c0_72, %c0_73, %c0_74] : memref<16x8x128xf32, #tpu.memory_space<vmem>>, vector<1x8x128xf32>
    %198 = vector.shape_cast %197 : vector<1x8x128xf32> to vector<8x128xf32>
    %199 = arith.addf %198, %135 : vector<8x128xf32>
    %c0_75 = arith.constant 0 : index
    %c0_76 = arith.constant 0 : index
    %c0_77 = arith.constant 0 : index
    %200 = vector.load %arg5[%c0_75, %c0_76, %c0_77] : memref<16x8x128xf32, #tpu.memory_space<vmem>>, vector<1x8x128xf32>
    %201 = vector.shape_cast %200 : vector<1x8x128xf32> to vector<8x128xf32>
    %202 = vector.shape_cast %199 : vector<8x128xf32> to vector<1x8x128xf32>
    tpu.vector_store %arg5[%c0_75, %c0_76, %c0_77], %202 {strides = array<i32>} : memref<16x8x128xf32, #tpu.memory_space<vmem>>, vector<1x8x128xf32>,
    %c1 = arith.constant 1 : index
    %c0_78 = arith.constant 0 : index
    %c0_79 = arith.constant 0 : index
    %203 = vector.load %arg5[%c1, %c0_78, %c0_79] : memref<16x8x128xf32, #tpu.memory_space<vmem>>, vector<1x8x128xf32>
    %204 = vector.shape_cast %203 : vector<1x8x128xf32> to vector<8x128xf32>
    %205 = arith.addf %204, %136 : vector<8x128xf32>
    %c1_80 = arith.constant 1 : index
    %c0_81 = arith.constant 0 : index
    %c0_82 = arith.constant 0 : index
    %206 = vector.load %arg5[%c1_80, %c0_81, %c0_82] : memref<16x8x128xf32, #tpu.memory_space<vmem>>, vector<1x8x128xf32>
    %207 = vector.shape_cast %206 : vector<1x8x128xf32> to vector<8x128xf32>
    %208 = vector.shape_cast %205 : vector<8x128xf32> to vector<1x8x128xf32>
    tpu.vector_store %arg5[%c1_80, %c0_81, %c0_82], %208 {strides = array<i32>} : memref<16x8x128xf32, #tpu.memory_space<vmem>>, vector<1x8x128xf32>,
    %c2 = arith.constant 2 : index
    %c0_83 = arith.constant 0 : index
    %c0_84 = arith.constant 0 : index
    %209 = vector.load %arg5[%c2, %c0_83, %c0_84] : memref<16x8x128xf32, #tpu.memory_space<vmem>>, vector<1x8x128xf32>
    %210 = vector.shape_cast %209 : vector<1x8x128xf32> to vector<8x128xf32>
    %211 = arith.addf %210, %138 : vector<8x128xf32>
    %c2_85 = arith.constant 2 : index
    %c0_86 = arith.constant 0 : index
    %c0_87 = arith.constant 0 : index
    %212 = vector.load %arg5[%c2_85, %c0_86, %c0_87] : memref<16x8x128xf32, #tpu.memory_space<vmem>>, vector<1x8x128xf32>
    %213 = vector.shape_cast %212 : vector<1x8x128xf32> to vector<8x128xf32>
    %214 = vector.shape_cast %211 : vector<8x128xf32> to vector<1x8x128xf32>
    tpu.vector_store %arg5[%c2_85, %c0_86, %c0_87], %214 {strides = array<i32>} : memref<16x8x128xf32, #tpu.memory_space<vmem>>, vector<1x8x128xf32>,
    %c3 = arith.constant 3 : index
    %c0_88 = arith.constant 0 : index
    %c0_89 = arith.constant 0 : index
    %215 = vector.load %arg5[%c3, %c0_88, %c0_89] : memref<16x8x128xf32, #tpu.memory_space<vmem>>, vector<1x8x128xf32>
    %216 = vector.shape_cast %215 : vector<1x8x128xf32> to vector<8x128xf32>
    %217 = arith.addf %216, %139 : vector<8x128xf32>
    %c3_90 = arith.constant 3 : index
    %c0_91 = arith.constant 0 : index
    %c0_92 = arith.constant 0 : index
    %218 = vector.load %arg5[%c3_90, %c0_91, %c0_92] : memref<16x8x128xf32, #tpu.memory_space<vmem>>, vector<1x8x128xf32>
    %219 = vector.shape_cast %218 : vector<1x8x128xf32> to vector<8x128xf32>
    %220 = vector.shape_cast %217 : vector<8x128xf32> to vector<1x8x128xf32>
    tpu.vector_store %arg5[%c3_90, %c0_91, %c0_92], %220 {strides = array<i32>} : memref<16x8x128xf32, #tpu.memory_space<vmem>>, vector<1x8x128xf32>,
    %c4 = arith.constant 4 : index
    %c0_93 = arith.constant 0 : index
    %c0_94 = arith.constant 0 : index
    %221 = vector.load %arg5[%c4, %c0_93, %c0_94] : memref<16x8x128xf32, #tpu.memory_space<vmem>>, vector<1x8x128xf32>
    %222 = vector.shape_cast %221 : vector<1x8x128xf32> to vector<8x128xf32>
    %223 = arith.addf %222, %140 : vector<8x128xf32>
    %c4_95 = arith.constant 4 : index
    %c0_96 = arith.constant 0 : index
    %c0_97 = arith.constant 0 : index
    %224 = vector.load %arg5[%c4_95, %c0_96, %c0_97] : memref<16x8x128xf32, #tpu.memory_space<vmem>>, vector<1x8x128xf32>
    %225 = vector.shape_cast %224 : vector<1x8x128xf32> to vector<8x128xf32>
    %226 = vector.shape_cast %223 : vector<8x128xf32> to vector<1x8x128xf32>
    tpu.vector_store %arg5[%c4_95, %c0_96, %c0_97], %226 {strides = array<i32>} : memref<16x8x128xf32, #tpu.memory_space<vmem>>, vector<1x8x128xf32>,
    %c5 = arith.constant 5 : index
    %c0_98 = arith.constant 0 : index
    %c0_99 = arith.constant 0 : index
    %227 = vector.load %arg5[%c5, %c0_98, %c0_99] : memref<16x8x128xf32, #tpu.memory_space<vmem>>, vector<1x8x128xf32>
    %228 = vector.shape_cast %227 : vector<1x8x128xf32> to vector<8x128xf32>
    %229 = arith.addf %228, %163 : vector<8x128xf32>
    %c5_100 = arith.constant 5 : index
    %c0_101 = arith.constant 0 : index
    %c0_102 = arith.constant 0 : index
    %230 = vector.load %arg5[%c5_100, %c0_101, %c0_102] : memref<16x8x128xf32, #tpu.memory_space<vmem>>, vector<1x8x128xf32>
    %231 = vector.shape_cast %230 : vector<1x8x128xf32> to vector<8x128xf32>
    %232 = vector.shape_cast %229 : vector<8x128xf32> to vector<1x8x128xf32>
    tpu.vector_store %arg5[%c5_100, %c0_101, %c0_102], %232 {strides = array<i32>} : memref<16x8x128xf32, #tpu.memory_space<vmem>>, vector<1x8x128xf32>,
    %c6 = arith.constant 6 : index
    %c0_103 = arith.constant 0 : index
    %c0_104 = arith.constant 0 : index
    %233 = vector.load %arg5[%c6, %c0_103, %c0_104] : memref<16x8x128xf32, #tpu.memory_space<vmem>>, vector<1x8x128xf32>
    %234 = vector.shape_cast %233 : vector<1x8x128xf32> to vector<8x128xf32>
    %235 = arith.addf %234, %164 : vector<8x128xf32>
    %c6_105 = arith.constant 6 : index
    %c0_106 = arith.constant 0 : index
    %c0_107 = arith.constant 0 : index
    %236 = vector.load %arg5[%c6_105, %c0_106, %c0_107] : memref<16x8x128xf32, #tpu.memory_space<vmem>>, vector<1x8x128xf32>
    %237 = vector.shape_cast %236 : vector<1x8x128xf32> to vector<8x128xf32>
    %238 = vector.shape_cast %235 : vector<8x128xf32> to vector<1x8x128xf32>
    tpu.vector_store %arg5[%c6_105, %c0_106, %c0_107], %238 {strides = array<i32>} : memref<16x8x128xf32, #tpu.memory_space<vmem>>, vector<1x8x128xf32>,
    %c7 = arith.constant 7 : index
    %c0_108 = arith.constant 0 : index
    %c0_109 = arith.constant 0 : index
    %239 = vector.load %arg5[%c7, %c0_108, %c0_109] : memref<16x8x128xf32, #tpu.memory_space<vmem>>, vector<1x8x128xf32>
    %240 = vector.shape_cast %239 : vector<1x8x128xf32> to vector<8x128xf32>
    %241 = arith.addf %240, %166 : vector<8x128xf32>
    %c7_110 = arith.constant 7 : index
    %c0_111 = arith.constant 0 : index
    %c0_112 = arith.constant 0 : index
    %242 = vector.load %arg5[%c7_110, %c0_111, %c0_112] : memref<16x8x128xf32, #tpu.memory_space<vmem>>, vector<1x8x128xf32>
    %243 = vector.shape_cast %242 : vector<1x8x128xf32> to vector<8x128xf32>
    %244 = vector.shape_cast %241 : vector<8x128xf32> to vector<1x8x128xf32>
    tpu.vector_store %arg5[%c7_110, %c0_111, %c0_112], %244 {strides = array<i32>} : memref<16x8x128xf32, #tpu.memory_space<vmem>>, vector<1x8x128xf32>,
    %c8_113 = arith.constant 8 : index
    %c0_114 = arith.constant 0 : index
    %c0_115 = arith.constant 0 : index
    %245 = vector.load %arg5[%c8_113, %c0_114, %c0_115] : memref<16x8x128xf32, #tpu.memory_space<vmem>>, vector<1x8x128xf32>
    %246 = vector.shape_cast %245 : vector<1x8x128xf32> to vector<8x128xf32>
    %247 = arith.addf %246, %167 : vector<8x128xf32>
    %c8_116 = arith.constant 8 : index
    %c0_117 = arith.constant 0 : index
    %c0_118 = arith.constant 0 : index
    %248 = vector.load %arg5[%c8_116, %c0_117, %c0_118] : memref<16x8x128xf32, #tpu.memory_space<vmem>>, vector<1x8x128xf32>
    %249 = vector.shape_cast %248 : vector<1x8x128xf32> to vector<8x128xf32>
    %250 = vector.shape_cast %247 : vector<8x128xf32> to vector<1x8x128xf32>
    tpu.vector_store %arg5[%c8_116, %c0_117, %c0_118], %250 {strides = array<i32>} : memref<16x8x128xf32, #tpu.memory_space<vmem>>, vector<1x8x128xf32>,
    %c9 = arith.constant 9 : index
    %c0_119 = arith.constant 0 : index
    %c0_120 = arith.constant 0 : index
    %251 = vector.load %arg5[%c9, %c0_119, %c0_120] : memref<16x8x128xf32, #tpu.memory_space<vmem>>, vector<1x8x128xf32>
    %252 = vector.shape_cast %251 : vector<1x8x128xf32> to vector<8x128xf32>
    %253 = arith.addf %252, %168 : vector<8x128xf32>
    %c9_121 = arith.constant 9 : index
    %c0_122 = arith.constant 0 : index
    %c0_123 = arith.constant 0 : index
    %254 = vector.load %arg5[%c9_121, %c0_122, %c0_123] : memref<16x8x128xf32, #tpu.memory_space<vmem>>, vector<1x8x128xf32>
    %255 = vector.shape_cast %254 : vector<1x8x128xf32> to vector<8x128xf32>
    %256 = vector.shape_cast %253 : vector<8x128xf32> to vector<1x8x128xf32>
    tpu.vector_store %arg5[%c9_121, %c0_122, %c0_123], %256 {strides = array<i32>} : memref<16x8x128xf32, #tpu.memory_space<vmem>>, vector<1x8x128xf32>,
    %c10 = arith.constant 10 : index
    %c0_124 = arith.constant 0 : index
    %c0_125 = arith.constant 0 : index
    %257 = vector.load %arg5[%c10, %c0_124, %c0_125] : memref<16x8x128xf32, #tpu.memory_space<vmem>>, vector<1x8x128xf32>
    %258 = vector.shape_cast %257 : vector<1x8x128xf32> to vector<8x128xf32>
    %259 = arith.addf %258, %191 : vector<8x128xf32>
    %c10_126 = arith.constant 10 : index
    %c0_127 = arith.constant 0 : index
    %c0_128 = arith.constant 0 : index
    %260 = vector.load %arg5[%c10_126, %c0_127, %c0_128] : memref<16x8x128xf32, #tpu.memory_space<vmem>>, vector<1x8x128xf32>
    %261 = vector.shape_cast %260 : vector<1x8x128xf32> to vector<8x128xf32>
    %262 = vector.shape_cast %259 : vector<8x128xf32> to vector<1x8x128xf32>
    tpu.vector_store %arg5[%c10_126, %c0_127, %c0_128], %262 {strides = array<i32>} : memref<16x8x128xf32, #tpu.memory_space<vmem>>, vector<1x8x128xf32>,
    %c11 = arith.constant 11 : index
    %c0_129 = arith.constant 0 : index
    %c0_130 = arith.constant 0 : index
    %263 = vector.load %arg5[%c11, %c0_129, %c0_130] : memref<16x8x128xf32, #tpu.memory_space<vmem>>, vector<1x8x128xf32>
    %264 = vector.shape_cast %263 : vector<1x8x128xf32> to vector<8x128xf32>
    %265 = arith.addf %264, %192 : vector<8x128xf32>
    %c11_131 = arith.constant 11 : index
    %c0_132 = arith.constant 0 : index
    %c0_133 = arith.constant 0 : index
    %266 = vector.load %arg5[%c11_131, %c0_132, %c0_133] : memref<16x8x128xf32, #tpu.memory_space<vmem>>, vector<1x8x128xf32>
    %267 = vector.shape_cast %266 : vector<1x8x128xf32> to vector<8x128xf32>
    %268 = vector.shape_cast %265 : vector<8x128xf32> to vector<1x8x128xf32>
    tpu.vector_store %arg5[%c11_131, %c0_132, %c0_133], %268 {strides = array<i32>} : memref<16x8x128xf32, #tpu.memory_space<vmem>>, vector<1x8x128xf32>,
    %c12 = arith.constant 12 : index
    %c0_134 = arith.constant 0 : index
    %c0_135 = arith.constant 0 : index
    %269 = vector.load %arg5[%c12, %c0_134, %c0_135] : memref<16x8x128xf32, #tpu.memory_space<vmem>>, vector<1x8x128xf32>
    %270 = vector.shape_cast %269 : vector<1x8x128xf32> to vector<8x128xf32>
    %271 = arith.addf %270, %194 : vector<8x128xf32>
    %c12_136 = arith.constant 12 : index
    %c0_137 = arith.constant 0 : index
    %c0_138 = arith.constant 0 : index
    %272 = vector.load %arg5[%c12_136, %c0_137, %c0_138] : memref<16x8x128xf32, #tpu.memory_space<vmem>>, vector<1x8x128xf32>
    %273 = vector.shape_cast %272 : vector<1x8x128xf32> to vector<8x128xf32>
    %274 = vector.shape_cast %271 : vector<8x128xf32> to vector<1x8x128xf32>
    tpu.vector_store %arg5[%c12_136, %c0_137, %c0_138], %274 {strides = array<i32>} : memref<16x8x128xf32, #tpu.memory_space<vmem>>, vector<1x8x128xf32>,
    %c13 = arith.constant 13 : index
    %c0_139 = arith.constant 0 : index
    %c0_140 = arith.constant 0 : index
    %275 = vector.load %arg5[%c13, %c0_139, %c0_140] : memref<16x8x128xf32, #tpu.memory_space<vmem>>, vector<1x8x128xf32>
    %276 = vector.shape_cast %275 : vector<1x8x128xf32> to vector<8x128xf32>
    %277 = arith.addf %276, %195 : vector<8x128xf32>
    %c13_141 = arith.constant 13 : index
    %c0_142 = arith.constant 0 : index
    %c0_143 = arith.constant 0 : index
    %278 = vector.load %arg5[%c13_141, %c0_142, %c0_143] : memref<16x8x128xf32, #tpu.memory_space<vmem>>, vector<1x8x128xf32>
    %279 = vector.shape_cast %278 : vector<1x8x128xf32> to vector<8x128xf32>
    %280 = vector.shape_cast %277 : vector<8x128xf32> to vector<1x8x128xf32>
    tpu.vector_store %arg5[%c13_141, %c0_142, %c0_143], %280 {strides = array<i32>} : memref<16x8x128xf32, #tpu.memory_space<vmem>>, vector<1x8x128xf32>,
    %c14 = arith.constant 14 : index
    %c0_144 = arith.constant 0 : index
    %c0_145 = arith.constant 0 : index
    %281 = vector.load %arg5[%c14, %c0_144, %c0_145] : memref<16x8x128xf32, #tpu.memory_space<vmem>>, vector<1x8x128xf32>
    %282 = vector.shape_cast %281 : vector<1x8x128xf32> to vector<8x128xf32>
    %283 = arith.addf %282, %196 : vector<8x128xf32>
    %c14_146 = arith.constant 14 : index
    %c0_147 = arith.constant 0 : index
    %c0_148 = arith.constant 0 : index
    %284 = vector.load %arg5[%c14_146, %c0_147, %c0_148] : memref<16x8x128xf32, #tpu.memory_space<vmem>>, vector<1x8x128xf32>
    %285 = vector.shape_cast %284 : vector<1x8x128xf32> to vector<8x128xf32>
    %286 = vector.shape_cast %283 : vector<8x128xf32> to vector<1x8x128xf32>
    tpu.vector_store %arg5[%c14_146, %c0_147, %c0_148], %286 {strides = array<i32>} : memref<16x8x128xf32, #tpu.memory_space<vmem>>, vector<1x8x128xf32>,
    %c15 = arith.constant 15 : index
    %c0_149 = arith.constant 0 : index
    %c0_150 = arith.constant 0 : index
    %287 = vector.load %arg5[%c15, %c0_149, %c0_150] : memref<16x8x128xf32, #tpu.memory_space<vmem>>, vector<1x8x128xf32>
    %288 = vector.shape_cast %287 : vector<1x8x128xf32> to vector<8x128xf32>
    %289 = arith.addf %288, %112 : vector<8x128xf32>
    %c15_151 = arith.constant 15 : index
    %c0_152 = arith.constant 0 : index
    %c0_153 = arith.constant 0 : index
    %290 = vector.load %arg5[%c15_151, %c0_152, %c0_153] : memref<16x8x128xf32, #tpu.memory_space<vmem>>, vector<1x8x128xf32>
    %291 = vector.shape_cast %290 : vector<1x8x128xf32> to vector<8x128xf32>
    %292 = vector.shape_cast %289 : vector<8x128xf32> to vector<1x8x128xf32>
    tpu.vector_store %arg5[%c15_151, %c0_152, %c0_153], %292 {strides = array<i32>} : memref<16x8x128xf32, #tpu.memory_space<vmem>>, vector<1x8x128xf32>,
    return
  }
  func.func @transform_0(%arg0: i32) -> (i32, i32) {
    %c0_i32 = arith.constant 0 : i32
    %c0_i32_0 = arith.constant 0 : i32
    return %arg0, %c0_i32 : i32, i32
  }
  func.func @transform_1(%arg0: i32) -> (i32, i32) {
    %c0_i32 = arith.constant 0 : i32
    %c0_i32_0 = arith.constant 0 : i32
    return %arg0, %c0_i32 : i32, i32
  }
  func.func @transform_2(%arg0: i32) -> (i32, i32) {
    %c0_i32 = arith.constant 0 : i32
    %c0_i32_0 = arith.constant 0 : i32
    return %arg0, %c0_i32 : i32, i32
  }
  func.func @transform_3(%arg0: i32) -> (i32, i32) {
    %c0_i32 = arith.constant 0 : i32
    %c0_i32_0 = arith.constant 0 : i32
    return %arg0, %c0_i32 : i32, i32
  }
  func.func @transform_4(%arg0: i32) -> (i32, i32, i32) {
    %c0_i32 = arith.constant 0 : i32
    %c0_i32_0 = arith.constant 0 : i32
    %c0_i32_1 = arith.constant 0 : i32
    %c0_i32_2 = arith.constant 0 : i32
    return %c0_i32, %c0_i32_0, %c0_i32_1 : i32, i32, i32
  }
}

</mosaic_0001>

<llo_original>
// kernel: tpu_custom_call.1
$region0: #{tpu_custom_call.1}
  #allocation0 [shape = 'u32[]', space=smem, size = 0x4, offset = 0x4, fixed_abs, tag = 'smem constant byte address 0x4 - core index']
  #allocation1 [shape = 'u32[144,128]{1,0:T(1,128)}', space=vmem, size = 0x12000, scoped, tag = 'internal scratch']
  %s0 = inlined_call_operand.hbm [shape: f32[16,128], index: 0, kind: input, shape index: {}]
  %s1 = inlined_call_operand.hbm [shape: f32[16,128], index: 1, kind: input, shape index: {}]
  %s2 = inlined_call_operand.hbm [shape: f32[16,128], index: 2, kind: input, shape index: {}]
  %s3 = inlined_call_operand.hbm [shape: f32[16,128], index: 3, kind: input, shape index: {}]
  %s4 = inlined_call_operand.hbm [shape: f32[16,8,128], index: 4, kind: output, shape index: {}]
  %s5 = sld [smem:[#allocation0]]
  $region46: #{tpu_custom_call.1} parent=0
    _
  %s7 = ssub.s32 1, %s5
  %s8 = scalar_select 0, %s7, %s5
  $region1: #{tpu_custom_call.1} parent=0
    #allocation2 [shape = 'u8[8192]{0}', space=vmem, size = 0x2000, scoped, tag = 'input window, operand 0, single buffered']
    #allocation3 [shape = 's32[1]{0}', space=sflag, size = 0x4, scoped, tag = 'scoped memory for tpu_custom_call.1']
    #allocation4 [shape = 's32[1]{0}', space=sflag, size = 0x4, scoped, tag = 'scoped memory for tpu_custom_call.1']
    #allocation5 [shape = 'u8[8192]{0}', space=vmem, size = 0x2000, scoped, tag = 'input window, operand 1, single buffered']
    #allocation6 [shape = 's32[1]{0}', space=sflag, size = 0x4, scoped, tag = 'scoped memory for tpu_custom_call.1']
    #allocation7 [shape = 'u8[8192]{0}', space=vmem, size = 0x2000, scoped, tag = 'input window, operand 2, single buffered']
    #allocation8 [shape = 'u8[8192]{0}', space=vmem, size = 0x2000, scoped, tag = 'input window, operand 3, single buffered']
    #allocation9 [shape = 's32[1]{0}', space=sflag, size = 0x4, scoped, tag = 'scoped memory for tpu_custom_call.1']
    #allocation10 [shape = 'u8[65536]{0}', space=vmem, size = 0x10000, scoped, tag = 'output window, operand 0, single buffered']
    %9 = vsyncpa [#allocation3], 0
    %10 = vsyncpa [#allocation6], 0
    %11 = vsyncpa [#allocation9], 0
    %12 = vsyncpa [#allocation4], 0
    // Predicated region
    $region2: #{tpu_custom_call.1} parent=1 // pred_check
      _
    $region3: #{tpu_custom_call.1} parent=1 // pred_check_branch
      %14 = sbr.rel (0) target = $region5
    $region4: #{tpu_custom_call.1} parent=1 // pred_region
      %s16 = ssub.s32 256, 256
      %17 = vsyncadd [#allocation3], %s16
      %s18 = sshll.u32 [#allocation2], 4
      %s19 = int_to_ptr.vmem [resolvable:$true] %s18
      %24 = dma.hbm_to_vmem [thread:$0]  %s0, 256, %s19, [#allocation3], 128, 128, 8
    $region5: #{tpu_custom_call.1} parent=1 // pred_fallthru
      _
    // Predicated region
    $region6: #{tpu_custom_call.1} parent=1 // pred_check
      _
    $region7: #{tpu_custom_call.1} parent=1 // pred_check_branch
      %26 = sbr.rel (0) target = $region9
    $region8: #{tpu_custom_call.1} parent=1 // pred_region
      %s28 = ssub.s32 256, 256
      %29 = vsyncadd [#allocation6], %s28
      %s30 = sshll.u32 [#allocation5], 4
      %s31 = int_to_ptr.vmem [resolvable:$true] %s30
      %36 = dma.hbm_to_vmem [thread:$0]  %s1, 256, %s31, [#allocation6], 128, 128, 8
    $region9: #{tpu_custom_call.1} parent=1 // pred_fallthru
      _
    // Predicated region
    $region10: #{tpu_custom_call.1} parent=1 // pred_check
      _
    $region11: #{tpu_custom_call.1} parent=1 // pred_check_branch
      %38 = sbr.rel (0) target = $region13
    $region12: #{tpu_custom_call.1} parent=1 // pred_region
      %s40 = ssub.s32 256, 256
      %41 = vsyncadd [#allocation6], %s40
      %s42 = sshll.u32 [#allocation7], 4
      %s43 = int_to_ptr.vmem [resolvable:$true] %s42
      %48 = dma.hbm_to_vmem [thread:$0]  %s2, 256, %s43, [#allocation6], 128, 128, 8
    $region13: #{tpu_custom_call.1} parent=1 // pred_fallthru
      _
    // Predicated region
    $region14: #{tpu_custom_call.1} parent=1 // pred_check
      _
    $region15: #{tpu_custom_call.1} parent=1 // pred_check_branch
      %50 = sbr.rel (0) target = $region17
    $region16: #{tpu_custom_call.1} parent=1 // pred_region
      %s52 = ssub.s32 256, 256
      %53 = vsyncadd [#allocation9], %s52
      %s54 = sshll.u32 [#allocation8], 4
      %s55 = int_to_ptr.vmem [resolvable:$true] %s54
      %60 = dma.hbm_to_vmem [thread:$0]  %s3, 256, %s55, [#allocation9], 128, 128, 8
    $region17: #{tpu_custom_call.1} parent=1 // pred_fallthru
      _
    // Predicated region
    $region18: #{tpu_custom_call.1} parent=1 // pred_check
      _
    $region19: #{tpu_custom_call.1} parent=1 // pred_check_branch
      %62 = sbr.rel (0) target = $region21
    $region20: #{tpu_custom_call.1} parent=1 // pred_region
      %63 = dma.done [#allocation3], 256
    $region21: #{tpu_custom_call.1} parent=1 // pred_fallthru
      _
    // Predicated region
    $region22: #{tpu_custom_call.1} parent=1 // pred_check
      _
    $region23: #{tpu_custom_call.1} parent=1 // pred_check_branch
      %65 = sbr.rel (0) target = $region25
    $region24: #{tpu_custom_call.1} parent=1 // pred_region
      %66 = dma.done [#allocation6], 256
    $region25: #{tpu_custom_call.1} parent=1 // pred_fallthru
      _
    // Predicated region
    $region26: #{tpu_custom_call.1} parent=1 // pred_check
      _
    $region27: #{tpu_custom_call.1} parent=1 // pred_check_branch
      %68 = sbr.rel (0) target = $region29
    $region28: #{tpu_custom_call.1} parent=1 // pred_region
      %69 = dma.done [#allocation6], 256
    $region29: #{tpu_custom_call.1} parent=1 // pred_fallthru
      _
    // Predicated region
    $region30: #{tpu_custom_call.1} parent=1 // pred_check
      _
    $region31: #{tpu_custom_call.1} parent=1 // pred_check_branch
      %71 = sbr.rel (0) target = $region33
    $region32: #{tpu_custom_call.1} parent=1 // pred_region
      %72 = dma.done [#allocation9], 256
    $region33: #{tpu_custom_call.1} parent=1 // pred_fallthru
      _
    %p73 = scmp.eq.s32.totalorder 0, 0
    // Predicated region
    $region34: #{tpu_custom_call.1} parent=1 // pred_check
      %p74 = pneg %p73
    $region35: #{tpu_custom_call.1} parent=1 // pred_check_branch
      %76 = sbr.rel (%p74) target = $region37
    $region36: #{tpu_custom_call.1} parent=1 // pred_region
      %77 = vst [vmem:[#allocation10] sm:$0xff] 0.0
      %78 = vst [vmem:[#allocation10 + $0x8] sm:$0xff] 0.0
      %79 = vst [vmem:[#allocation10 + $0x10] sm:$0xff] 0.0
      %80 = vst [vmem:[#allocation10 + $0x18] sm:$0xff] 0.0
      %81 = vst [vmem:[#allocation10 + $0x20] sm:$0xff] 0.0
      %82 = vst [vmem:[#allocation10 + $0x28] sm:$0xff] 0.0
      %83 = vst [vmem:[#allocation10 + $0x30] sm:$0xff] 0.0
      %84 = vst [vmem:[#allocation10 + $0x38] sm:$0xff] 0.0
      %85 = vst [vmem:[#allocation10 + $0x40] sm:$0xff] 0.0
      %86 = vst [vmem:[#allocation10 + $0x48] sm:$0xff] 0.0
      %87 = vst [vmem:[#allocation10 + $0x50] sm:$0xff] 0.0
      %88 = vst [vmem:[#allocation10 + $0x58] sm:$0xff] 0.0
      %89 = vst [vmem:[#allocation10 + $0x60] sm:$0xff] 0.0
      %90 = vst [vmem:[#allocation10 + $0x68] sm:$0xff] 0.0
      %91 = vst [vmem:[#allocation10 + $0x70] sm:$0xff] 0.0
      %92 = vst [vmem:[#allocation10 + $0x78] sm:$0xff] 0.0
    $region37: #{tpu_custom_call.1} parent=1 // pred_fallthru
      _
    %v93 = vld [vmem:[#allocation8] sm:$0xff]
    %v94 = vld [vmem:[#allocation2] sm:$0xff]
    %v95 = vld [vmem:[#allocation5] sm:$0xff]
    %v96 = vld [vmem:[#allocation7] sm:$0xff]
    %v97 = vadd.f32 %v93, 0.0
    %v98 = vand.u32 2147483647, %v94
    %v99 = vsub.f32 0.0, %v98
    %v100 = vmul.f32 %v99, 1.442695
    %v101 = vpow.pop %v100
    %v102 = vadd.f32 %v101, 1.0
    %v103 = vmax.f32 %v94, 0.0
    %v104 = vmul.f32 %v94, %v93
    %v105 = vsub.f32 %v103, %v104
    %v106 = vlog2.pop %v102
    %v107 = vmul.f32 %v106, 0.6931472
    %v108 = vadd.f32 %v105, %v107
    %v109 = vrcp.pop %v102
    %vm110 = vcmp.ge.f32.partialorder %v94, 0.0
    %v111 = vmul.f32 %v101, %v109
    %v112 = vsel %vm110, %v109, %v111
    %v113 = vsel %vm110, %v93, 0.0
    %v114 = vsel %vm110, 1.0, 0.0
    %v115 = vadd.f32 %v108, 0.0
    %v116 = vadd.f32 %v112, 0.0
    %v117 = vmul.f32 %v112, %v93
    %v118 = vadd.f32 %v117, 0.0
    %v119 = vadd.f32 %v113, 0.0
    %v120 = vadd.f32 %v114, 0.0
    %v121 = vand.u32 2147483647, %v95
    %v122 = vsub.f32 0.0, %v121
    %v123 = vmul.f32 %v122, 1.442695
    %v124 = vpow.pop %v123
    %v125 = vadd.f32 %v124, 1.0
    %v126 = vmax.f32 %v95, 0.0
    %v127 = vmul.f32 %v95, %v93
    %v128 = vsub.f32 %v126, %v127
    %v129 = vlog2.pop %v125
    %v130 = vmul.f32 %v129, 0.6931472
    %v131 = vadd.f32 %v128, %v130
    %v132 = vrcp.pop %v125
    %vm133 = vcmp.ge.f32.partialorder %v95, 0.0
    %v134 = vmul.f32 %v124, %v132
    %v135 = vsel %vm133, %v132, %v134
    %v136 = vsel %vm133, %v93, 0.0
    %v137 = vsel %vm133, 1.0, 0.0
    %v138 = vadd.f32 %v131, 0.0
    %v139 = vadd.f32 %v135, 0.0
    %v140 = vmul.f32 %v135, %v93
    %v141 = vadd.f32 %v140, 0.0
    %v142 = vadd.f32 %v136, 0.0
    %v143 = vadd.f32 %v137, 0.0
    %v144 = vand.u32 2147483647, %v96
    %v145 = vsub.f32 0.0, %v144
    %v146 = vmul.f32 %v145, 1.442695
    %v147 = vpow.pop %v146
    %v148 = vadd.f32 %v147, 1.0
    %v149 = vmax.f32 %v96, 0.0
    %v150 = vmul.f32 %v96, %v93
    %v151 = vsub.f32 %v149, %v150
    %v152 = vlog2.pop %v148
    %v153 = vmul.f32 %v152, 0.6931472
    %v154 = vadd.f32 %v151, %v153
    %v155 = vrcp.pop %v148
    %vm156 = vcmp.ge.f32.partialorder %v96, 0.0
    %v157 = vmul.f32 %v147, %v155
    %v158 = vsel %vm156, %v155, %v157
    %v159 = vsel %vm156, %v93, 0.0
    %v160 = vsel %vm156, 1.0, 0.0
    %v161 = vadd.f32 %v154, 0.0
    %v162 = vadd.f32 %v158, 0.0
    %v163 = vmul.f32 %v158, %v93
    %v164 = vadd.f32 %v163, 0.0
    %v165 = vadd.f32 %v159, 0.0
    %v166 = vadd.f32 %v160, 0.0
    %v167 = vld [vmem:[#allocation8 + $0x8] sm:$0xff]
    %v168 = vld [vmem:[#allocation2 + $0x8] sm:$0xff]
    %v169 = vld [vmem:[#allocation5 + $0x8] sm:$0xff]
    %v170 = vld [vmem:[#allocation7 + $0x8] sm:$0xff]
    %v171 = vadd.f32 %v97, %v167
    %v172 = vand.u32 2147483647, %v168
    %v173 = vsub.f32 0.0, %v172
    %v174 = vmul.f32 %v173, 1.442695
    %v175 = vpow.pop %v174
    %v176 = vadd.f32 %v175, 1.0
    %v177 = vmax.f32 %v168, 0.0
    %v178 = vmul.f32 %v168, %v167
    %v179 = vsub.f32 %v177, %v178
    %v180 = vlog2.pop %v176
    %v181 = vmul.f32 %v180, 0.6931472
    %v182 = vadd.f32 %v179, %v181
    %v183 = vrcp.pop %v176
    %vm184 = vcmp.ge.f32.partialorder %v168, 0.0
    %v185 = vmul.f32 %v175, %v183
    %v186 = vsel %vm184, %v183, %v185
    %v187 = vsel %vm184, %v167, 0.0
    %v188 = vsel %vm184, 1.0, 0.0
    %v189 = vadd.f32 %v115, %v182
    %v190 = vadd.f32 %v116, %v186
    %v191 = vmul.f32 %v186, %v167
    %v192 = vadd.f32 %v118, %v191
    %v193 = vadd.f32 %v119, %v187
    %v194 = vadd.f32 %v120, %v188
    %v195 = vand.u32 2147483647, %v169
    %v196 = vsub.f32 0.0, %v195
    %v197 = vmul.f32 %v196, 1.442695
    %v198 = vpow.pop %v197
    %v199 = vadd.f32 %v198, 1.0
    %v200 = vmax.f32 %v169, 0.0
    %v201 = vmul.f32 %v169, %v167
    %v202 = vsub.f32 %v200, %v201
    %v203 = vlog2.pop %v199
    %v204 = vmul.f32 %v203, 0.6931472
    %v205 = vadd.f32 %v202, %v204
    %v206 = vrcp.pop %v199
    %vm207 = vcmp.ge.f32.partialorder %v169, 0.0
    %v208 = vmul.f32 %v198, %v206
    %v209 = vsel %vm207, %v206, %v208
    %v210 = vsel %vm207, %v167, 0.0
    %v211 = vsel %vm207, 1.0, 0.0
    %v212 = vadd.f32 %v138, %v205
    %v213 = vadd.f32 %v139, %v209
    %v214 = vmul.f32 %v209, %v167
    %v215 = vadd.f32 %v141, %v214
    %v216 = vadd.f32 %v142, %v210
    %v217 = vadd.f32 %v143, %v211
    %v218 = vand.u32 2147483647, %v170
    %v219 = vsub.f32 0.0, %v218
    %v220 = vmul.f32 %v219, 1.442695
    %v221 = vpow.pop %v220
    %v222 = vadd.f32 %v221, 1.0
    %v223 = vmax.f32 %v170, 0.0
    %v224 = vmul.f32 %v170, %v167
    %v225 = vsub.f32 %v223, %v224
    %v226 = vlog2.pop %v222
    %v227 = vmul.f32 %v226, 0.6931472
    %v228 = vadd.f32 %v225, %v227
    %v229 = vrcp.pop %v222
    %vm230 = vcmp.ge.f32.partialorder %v170, 0.0
    %v231 = vmul.f32 %v221, %v229
    %v232 = vsel %vm230, %v229, %v231
    %v233 = vsel %vm230, %v167, 0.0
    %v234 = vsel %vm230, 1.0, 0.0
    %v235 = vadd.f32 %v161, %v228
    %v236 = vadd.f32 %v162, %v232
    %v237 = vmul.f32 %v232, %v167
    %v238 = vadd.f32 %v164, %v237
    %v239 = vadd.f32 %v165, %v233
    %v240 = vadd.f32 %v166, %v234
    %v241 = vld [vmem:[#allocation10] sm:$0xff]
    %v242 = vadd.f32 %v241, %v189
    %243 = vst [vmem:[#allocation10] sm:$0xff] %v242
    %s244 = scalar_lea.vmem [#allocation10], 8
    %v245 = vld [vmem:[%s244] sm:$0xff]
    %v246 = vadd.f32 %v245, %v190
    %247 = vst [vmem:[%s244] sm:$0xff] %v246
    %s248 = scalar_lea.vmem [#allocation10], 16
    %v249 = vld [vmem:[%s248] sm:$0xff]
    %v250 = vadd.f32 %v249, %v192
    %251 = vst [vmem:[%s248] sm:$0xff] %v250
    %s252 = scalar_lea.vmem [#allocation10], 24
    %v253 = vld [vmem:[%s252] sm:$0xff]
    %v254 = vadd.f32 %v253, %v193
    %255 = vst [vmem:[%s252] sm:$0xff] %v254
    %s256 = scalar_lea.vmem [#allocation10], 32
    %v257 = vld [vmem:[%s256] sm:$0xff]
    %v258 = vadd.f32 %v257, %v194
    %259 = vst [vmem:[%s256] sm:$0xff] %v258
    %s260 = scalar_lea.vmem [#allocation10], 40
    %v261 = vld [vmem:[%s260] sm:$0xff]
    %v262 = vadd.f32 %v261, %v212
    %263 = vst [vmem:[%s260] sm:$0xff] %v262
    %s264 = scalar_lea.vmem [#allocation10], 48
    %v265 = vld [vmem:[%s264] sm:$0xff]
    %v266 = vadd.f32 %v265, %v213
    %267 = vst [vmem:[%s264] sm:$0xff] %v266
    %s268 = scalar_lea.vmem [#allocation10], 56
    %v269 = vld [vmem:[%s268] sm:$0xff]
    %v270 = vadd.f32 %v269, %v215
    %271 = vst [vmem:[%s268] sm:$0xff] %v270
    %s272 = scalar_lea.vmem [#allocation10], 64
    %v273 = vld [vmem:[%s272] sm:$0xff]
    %v274 = vadd.f32 %v273, %v216
    %275 = vst [vmem:[%s272] sm:$0xff] %v274
    %s276 = scalar_lea.vmem [#allocation10], 72
    %v277 = vld [vmem:[%s276] sm:$0xff]
    %v278 = vadd.f32 %v277, %v217
    %279 = vst [vmem:[%s276] sm:$0xff] %v278
    %s280 = scalar_lea.vmem [#allocation10], 80
    %v281 = vld [vmem:[%s280] sm:$0xff]
    %v282 = vadd.f32 %v281, %v235
    %283 = vst [vmem:[%s280] sm:$0xff] %v282
    %s284 = scalar_lea.vmem [#allocation10], 88
    %v285 = vld [vmem:[%s284] sm:$0xff]
    %v286 = vadd.f32 %v285, %v236
    %287 = vst [vmem:[%s284] sm:$0xff] %v286
    %s288 = scalar_lea.vmem [#allocation10], 96
    %v289 = vld [vmem:[%s288] sm:$0xff]
    %v290 = vadd.f32 %v289, %v238
    %291 = vst [vmem:[%s288] sm:$0xff] %v290
    %s292 = scalar_lea.vmem [#allocation10], 104
    %v293 = vld [vmem:[%s292] sm:$0xff]
    %v294 = vadd.f32 %v293, %v239
    %295 = vst [vmem:[%s292] sm:$0xff] %v294
    %s296 = scalar_lea.vmem [#allocation10], 112
    %v297 = vld [vmem:[%s296] sm:$0xff]
    %v298 = vadd.f32 %v297, %v240
    %299 = vst [vmem:[%s296] sm:$0xff] %v298
    %s300 = scalar_lea.vmem [#allocation10], 120
    %v301 = vld [vmem:[%s300] sm:$0xff]
    %v302 = vadd.f32 %v301, %v171
    %303 = vst [vmem:[%s300] sm:$0xff] %v302
    // Predicated region
    $region38: #{tpu_custom_call.1} parent=1 // pred_check
      _
    $region39: #{tpu_custom_call.1} parent=1 // pred_check_branch
      %305 = sbr.rel (0) target = $region41
    $region40: #{tpu_custom_call.1} parent=1 // pred_region
      %s307 = ssub.s32 2048, 2048
      %308 = vsyncadd [#allocation4], %s307
      %s309 = sshll.u32 [#allocation10], 4
      %s310 = int_to_ptr.vmem [resolvable:$true] %s309
      %315 = dma.vmem_to_hbm [thread:$0]  %s310, 2048, %s4, [#allocation4], 128, 128, 8
    $region41: #{tpu_custom_call.1} parent=1 // pred_fallthru
      _
    // Predicated region
    $region42: #{tpu_custom_call.1} parent=1 // pred_check
      _
    $region43: #{tpu_custom_call.1} parent=1 // pred_check_branch
      %317 = sbr.rel (0) target = $region45
    $region44: #{tpu_custom_call.1} parent=1 // pred_region
      %318 = dma.done [#allocation4], 2048
    $region45: #{tpu_custom_call.1} parent=1 // pred_fallthru
      _
    %319 = vsyncpa [#allocation3], 1
    %320 = vsyncpa [#allocation6], 1
    %321 = vsyncpa [#allocation9], 1
    %322 = vsyncpa [#allocation4], 1

</llo_original>
